<compile_context>
chip_gen: v7x
topology: tpu7x:2x2x1
jax: 0.10.0
libtpu: 0.0.40
codegen_flags: <defaults>
</compile_context>

<pallas_src>
import functools

import jax
import jax.numpy as jnp
import numpy as np
from jax.experimental import pallas as pl
from jax.experimental.pallas import tpu as pltpu


def _transpose_minor_kernel(x_ref, o_ref, *, pt):
    """x_ref: (Pt, M, N) -> o_ref: (Pt, N, M).

    Static unroll over the batched leading dim; each iteration is a rank-2
    minor-dim transpose, which lowers to the XLU transpose path on TPU.
    """
    for i in range(pt):
        o_ref[i] = x_ref[i].T


def _swap_last_two(x, *, max_block_bytes=2 << 20, max_unroll=16):
    """Pallas transpose of the last two dims of an N-D array (rank >= 2)."""
    shape = x.shape
    M, N = shape[-2], shape[-1]
    P = int(np.prod(shape[:-2])) if len(shape) > 2 else 1

    # Collapse leading dims (free, row-major reshape — no data movement).
    x3 = x.reshape(P, M, N)

    # Batch Pt rows per grid step: amortize grid overhead, keep the in-kernel
    # unroll modest, and stay within a conservative VMEM budget (double-buffered
    # input + output blocks remain well under the 32 MiB scoped default).
    itemsize = np.dtype(x.dtype).itemsize
    slice_bytes = max(1, M * N * itemsize)
    pt = int(max(1, min(P, max_unroll, max_block_bytes // slice_bytes)))
    grid = (pl.cdiv(P, pt),)

    out3 = pl.pallas_call(
        functools.partial(_transpose_minor_kernel, pt=pt),
        grid=grid,
        in_specs=[pl.BlockSpec((pt, M, N), lambda p: (p, 0, 0))],
        out_specs=pl.BlockSpec((pt, N, M), lambda p: (p, 0, 0)),
        out_shape=jax.ShapeDtypeStruct((P, N, M), x.dtype),
        compiler_params=pltpu.CompilerParams(
            dimension_semantics=("parallel",),  # batch axis: shard across TCs on v7x
        ),
    )(x3)

    return out3.reshape(tuple(shape[:-2]) + (N, M))


def transpose_module(x, dim0: int, dim1: int):
    """Equivalent of PyTorch TransposeModule(dim0, dim1).forward(x)."""
    nd = x.ndim
    d0 = dim0 % nd
    d1 = dim1 % nd
    if d0 == d1:
        return x
    d0, d1 = min(d0, d1), max(d0, d1)
    if (d0, d1) == (nd - 2, nd - 1):
        return _swap_last_two(x)
    # TODO(synk): swaps that do not involve the last two dims require a non-minor
    # permutation that Mosaic's transpose lowering does not express in one pass;
    # left to XLA for those dim pairs.
    return jnp.swapaxes(x, d0, d1)


class TransposeModule:
    """Drop-in mirror of the PyTorch module's interface."""

    def __init__(self, dim0: int, dim1: int):
        self.dim0 = dim0
        self.dim1 = dim1

    def __call__(self, x):
        return transpose_module(x, self.dim0, self.dim1)


if __name__ == "__main__":
    key = jax.random.PRNGKey(0)
    # NCHW-style input; TransposeModule(2, 3) swaps the two minor (spatial) dims.
    x = jax.random.normal(key, (2, 4, 16, 32), jnp.float32)

    module = TransposeModule(2, 3)
    y = module(x)
    jax.block_until_ready(y)

    y_ref = jnp.swapaxes(x, 2, 3)
    assert y.shape == y_ref.shape, (y.shape, y_ref.shape)
    assert bool(jnp.array_equal(y, y_ref)), "Pallas transpose mismatch vs reference"

    print("KERNEL_OK")
</pallas_src>

<mosaic_0001>
module attributes {stable_mosaic.version = 11 : i64} {
  func.func @_transpose_minor_kernel(%arg0: i32, %arg1: memref<8x16x32xf32, #tpu.memory_space<vmem>>, %arg2: memref<8x32x16xf32, #tpu.memory_space<vmem>>) attributes {dimension_semantics = [#tpu.dimension_semantics<parallel>], iteration_bounds = array<i64: 1>, scalar_prefetch = 0 : i64, scratch_operands = 0 : i64, tpu.core_type = #tpu.core_type<tc>, window_params = [{transform_indices = @transform_0, window_bounds = array<i64: 8, 16, 32>}, {transform_indices = @transform_1, window_bounds = array<i64: 8, 32, 16>}]} {
    %c0 = arith.constant 0 : index
    %c0_0 = arith.constant 0 : index
    %c0_1 = arith.constant 0 : index
    %0 = vector.load %arg1[%c0, %c0_0, %c0_1] : memref<8x16x32xf32, #tpu.memory_space<vmem>>, vector<1x16x32xf32>
    %1 = vector.shape_cast %0 : vector<1x16x32xf32> to vector<16x32xf32>
    %2 = tpu.transpose %1, [1, 0] : vector<16x32xf32> -> vector<32x16xf32>
    %c0_2 = arith.constant 0 : index
    %c0_3 = arith.constant 0 : index
    %c0_4 = arith.constant 0 : index
    %3 = vector.load %arg2[%c0_2, %c0_3, %c0_4] : memref<8x32x16xf32, #tpu.memory_space<vmem>>, vector<1x32x16xf32>
    %4 = vector.shape_cast %3 : vector<1x32x16xf32> to vector<32x16xf32>
    %5 = vector.shape_cast %2 : vector<32x16xf32> to vector<1x32x16xf32>
    tpu.vector_store %arg2[%c0_2, %c0_3, %c0_4], %5 {strides = array<i32>} : memref<8x32x16xf32, #tpu.memory_space<vmem>>, vector<1x32x16xf32>,
    %c1 = arith.constant 1 : index
    %c0_5 = arith.constant 0 : index
    %c0_6 = arith.constant 0 : index
    %6 = vector.load %arg1[%c1, %c0_5, %c0_6] : memref<8x16x32xf32, #tpu.memory_space<vmem>>, vector<1x16x32xf32>
    %7 = vector.shape_cast %6 : vector<1x16x32xf32> to vector<16x32xf32>
    %8 = tpu.transpose %7, [1, 0] : vector<16x32xf32> -> vector<32x16xf32>
    %c1_7 = arith.constant 1 : index
    %c0_8 = arith.constant 0 : index
    %c0_9 = arith.constant 0 : index
    %9 = vector.load %arg2[%c1_7, %c0_8, %c0_9] : memref<8x32x16xf32, #tpu.memory_space<vmem>>, vector<1x32x16xf32>
    %10 = vector.shape_cast %9 : vector<1x32x16xf32> to vector<32x16xf32>
    %11 = vector.shape_cast %8 : vector<32x16xf32> to vector<1x32x16xf32>
    tpu.vector_store %arg2[%c1_7, %c0_8, %c0_9], %11 {strides = array<i32>} : memref<8x32x16xf32, #tpu.memory_space<vmem>>, vector<1x32x16xf32>,
    %c2 = arith.constant 2 : index
    %c0_10 = arith.constant 0 : index
    %c0_11 = arith.constant 0 : index
    %12 = vector.load %arg1[%c2, %c0_10, %c0_11] : memref<8x16x32xf32, #tpu.memory_space<vmem>>, vector<1x16x32xf32>
    %13 = vector.shape_cast %12 : vector<1x16x32xf32> to vector<16x32xf32>
    %14 = tpu.transpose %13, [1, 0] : vector<16x32xf32> -> vector<32x16xf32>
    %c2_12 = arith.constant 2 : index
    %c0_13 = arith.constant 0 : index
    %c0_14 = arith.constant 0 : index
    %15 = vector.load %arg2[%c2_12, %c0_13, %c0_14] : memref<8x32x16xf32, #tpu.memory_space<vmem>>, vector<1x32x16xf32>
    %16 = vector.shape_cast %15 : vector<1x32x16xf32> to vector<32x16xf32>
    %17 = vector.shape_cast %14 : vector<32x16xf32> to vector<1x32x16xf32>
    tpu.vector_store %arg2[%c2_12, %c0_13, %c0_14], %17 {strides = array<i32>} : memref<8x32x16xf32, #tpu.memory_space<vmem>>, vector<1x32x16xf32>,
    %c3 = arith.constant 3 : index
    %c0_15 = arith.constant 0 : index
    %c0_16 = arith.constant 0 : index
    %18 = vector.load %arg1[%c3, %c0_15, %c0_16] : memref<8x16x32xf32, #tpu.memory_space<vmem>>, vector<1x16x32xf32>
    %19 = vector.shape_cast %18 : vector<1x16x32xf32> to vector<16x32xf32>
    %20 = tpu.transpose %19, [1, 0] : vector<16x32xf32> -> vector<32x16xf32>
    %c3_17 = arith.constant 3 : index
    %c0_18 = arith.constant 0 : index
    %c0_19 = arith.constant 0 : index
    %21 = vector.load %arg2[%c3_17, %c0_18, %c0_19] : memref<8x32x16xf32, #tpu.memory_space<vmem>>, vector<1x32x16xf32>
    %22 = vector.shape_cast %21 : vector<1x32x16xf32> to vector<32x16xf32>
    %23 = vector.shape_cast %20 : vector<32x16xf32> to vector<1x32x16xf32>
    tpu.vector_store %arg2[%c3_17, %c0_18, %c0_19], %23 {strides = array<i32>} : memref<8x32x16xf32, #tpu.memory_space<vmem>>, vector<1x32x16xf32>,
    %c4 = arith.constant 4 : index
    %c0_20 = arith.constant 0 : index
    %c0_21 = arith.constant 0 : index
    %24 = vector.load %arg1[%c4, %c0_20, %c0_21] : memref<8x16x32xf32, #tpu.memory_space<vmem>>, vector<1x16x32xf32>
    %25 = vector.shape_cast %24 : vector<1x16x32xf32> to vector<16x32xf32>
    %26 = tpu.transpose %25, [1, 0] : vector<16x32xf32> -> vector<32x16xf32>
    %c4_22 = arith.constant 4 : index
    %c0_23 = arith.constant 0 : index
    %c0_24 = arith.constant 0 : index
    %27 = vector.load %arg2[%c4_22, %c0_23, %c0_24] : memref<8x32x16xf32, #tpu.memory_space<vmem>>, vector<1x32x16xf32>
    %28 = vector.shape_cast %27 : vector<1x32x16xf32> to vector<32x16xf32>
    %29 = vector.shape_cast %26 : vector<32x16xf32> to vector<1x32x16xf32>
    tpu.vector_store %arg2[%c4_22, %c0_23, %c0_24], %29 {strides = array<i32>} : memref<8x32x16xf32, #tpu.memory_space<vmem>>, vector<1x32x16xf32>,
    %c5 = arith.constant 5 : index
    %c0_25 = arith.constant 0 : index
    %c0_26 = arith.constant 0 : index
    %30 = vector.load %arg1[%c5, %c0_25, %c0_26] : memref<8x16x32xf32, #tpu.memory_space<vmem>>, vector<1x16x32xf32>
    %31 = vector.shape_cast %30 : vector<1x16x32xf32> to vector<16x32xf32>
    %32 = tpu.transpose %31, [1, 0] : vector<16x32xf32> -> vector<32x16xf32>
    %c5_27 = arith.constant 5 : index
    %c0_28 = arith.constant 0 : index
    %c0_29 = arith.constant 0 : index
    %33 = vector.load %arg2[%c5_27, %c0_28, %c0_29] : memref<8x32x16xf32, #tpu.memory_space<vmem>>, vector<1x32x16xf32>
    %34 = vector.shape_cast %33 : vector<1x32x16xf32> to vector<32x16xf32>
    %35 = vector.shape_cast %32 : vector<32x16xf32> to vector<1x32x16xf32>
    tpu.vector_store %arg2[%c5_27, %c0_28, %c0_29], %35 {strides = array<i32>} : memref<8x32x16xf32, #tpu.memory_space<vmem>>, vector<1x32x16xf32>,
    %c6 = arith.constant 6 : index
    %c0_30 = arith.constant 0 : index
    %c0_31 = arith.constant 0 : index
    %36 = vector.load %arg1[%c6, %c0_30, %c0_31] : memref<8x16x32xf32, #tpu.memory_space<vmem>>, vector<1x16x32xf32>
    %37 = vector.shape_cast %36 : vector<1x16x32xf32> to vector<16x32xf32>
    %38 = tpu.transpose %37, [1, 0] : vector<16x32xf32> -> vector<32x16xf32>
    %c6_32 = arith.constant 6 : index
    %c0_33 = arith.constant 0 : index
    %c0_34 = arith.constant 0 : index
    %39 = vector.load %arg2[%c6_32, %c0_33, %c0_34] : memref<8x32x16xf32, #tpu.memory_space<vmem>>, vector<1x32x16xf32>
    %40 = vector.shape_cast %39 : vector<1x32x16xf32> to vector<32x16xf32>
    %41 = vector.shape_cast %38 : vector<32x16xf32> to vector<1x32x16xf32>
    tpu.vector_store %arg2[%c6_32, %c0_33, %c0_34], %41 {strides = array<i32>} : memref<8x32x16xf32, #tpu.memory_space<vmem>>, vector<1x32x16xf32>,
    %c7 = arith.constant 7 : index
    %c0_35 = arith.constant 0 : index
    %c0_36 = arith.constant 0 : index
    %42 = vector.load %arg1[%c7, %c0_35, %c0_36] : memref<8x16x32xf32, #tpu.memory_space<vmem>>, vector<1x16x32xf32>
    %43 = vector.shape_cast %42 : vector<1x16x32xf32> to vector<16x32xf32>
    %44 = tpu.transpose %43, [1, 0] : vector<16x32xf32> -> vector<32x16xf32>
    %c7_37 = arith.constant 7 : index
    %c0_38 = arith.constant 0 : index
    %c0_39 = arith.constant 0 : index
    %45 = vector.load %arg2[%c7_37, %c0_38, %c0_39] : memref<8x32x16xf32, #tpu.memory_space<vmem>>, vector<1x32x16xf32>
    %46 = vector.shape_cast %45 : vector<1x32x16xf32> to vector<32x16xf32>
    %47 = vector.shape_cast %44 : vector<32x16xf32> to vector<1x32x16xf32>
    tpu.vector_store %arg2[%c7_37, %c0_38, %c0_39], %47 {strides = array<i32>} : memref<8x32x16xf32, #tpu.memory_space<vmem>>, vector<1x32x16xf32>,
    return
  }
  func.func @transform_0(%arg0: i32) -> (i32, i32, i32) {
    %c0_i32 = arith.constant 0 : i32
    %c0_i32_0 = arith.constant 0 : i32
    %c0_i32_1 = arith.constant 0 : i32
    return %arg0, %c0_i32, %c0_i32_0 : i32, i32, i32
  }
  func.func @transform_1(%arg0: i32) -> (i32, i32, i32) {
    %c0_i32 = arith.constant 0 : i32
    %c0_i32_0 = arith.constant 0 : i32
    %c0_i32_1 = arith.constant 0 : i32
    return %arg0, %c0_i32, %c0_i32_0 : i32, i32, i32
  }
}

</mosaic_0001>

<llo_original>
// kernel: tpu_custom_call.1
$region0: #{tpu_custom_call.1}
  #allocation0 [shape = 'u32[]', space=smem, size = 0x4, offset = 0x4, fixed_abs, tag = 'smem constant byte address 0x4 - core index']
  #allocation1 [shape = 'u32[144,128]{1,0:T(1,128)}', space=vmem, size = 0x12000, scoped, tag = 'internal scratch']
  %s0 = inlined_call_operand.hbm [shape: f32[8,16,32], index: 0, kind: input, shape index: {}]
  %s1 = inlined_call_operand.vmem [shape: f32[8,32,16], index: 1, kind: output, shape index: {}]
  %s2 = sld [smem:[#allocation0]]
  $region18: #{tpu_custom_call.1} parent=0
    _
  %s4 = ssub.s32 1, %s2
  %s5 = scalar_select 0, %s4, %s2
  $region1: #{tpu_custom_call.1} parent=0
    #allocation2 [shape = 'u8[65536]{0}', space=vmem, size = 0x10000, scoped, tag = 'input window, operand 0, single buffered']
    #allocation3 [shape = 's32[1]{0}', space=sflag, size = 0x4, scoped, tag = 'scoped memory for tpu_custom_call.1']
    %6 = vsyncpa [#allocation3], 0
    // Predicated region
    $region2: #{tpu_custom_call.1} parent=1 // pred_check
      _
    $region3: #{tpu_custom_call.1} parent=1 // pred_check_branch
      %8 = sbr.rel (0) target = $region5
    $region4: #{tpu_custom_call.1} parent=1 // pred_region
      %s10 = ssub.s32 2048, 2048
      %11 = vsyncadd [#allocation3], %s10
      %s12 = sshll.u32 [#allocation2], 4
      %s13 = int_to_ptr.vmem [resolvable:$true] %s12
      %18 = dma.hbm_to_vmem [thread:$0]  %s0, 2048, %s13, [#allocation3], 128, 128, 8
    $region5: #{tpu_custom_call.1} parent=1 // pred_fallthru
      _
    // Predicated region
    $region6: #{tpu_custom_call.1} parent=1 // pred_check
      _
    $region7: #{tpu_custom_call.1} parent=1 // pred_check_branch
      %20 = sbr.rel (0) target = $region9
    $region8: #{tpu_custom_call.1} parent=1 // pred_region
      %21 = dma.done [#allocation3], 2048
    $region9: #{tpu_custom_call.1} parent=1 // pred_fallthru
      _
    %v22 = vld [vmem:[#allocation2] sm:$0xff]
    %v23 = vld [vmem:[#allocation2 + $0x8] sm:$0xff]
    %24 = vxpose.xlu0.b32.start [1/16] %v22, 128
    %25 = vxpose.xlu0.b32.cont [2/16] %v23, 128
    %26 = vxpose.xlu0.b32.cont [3/16] 0.0, 128
    %27 = vxpose.xlu0.b32.cont [4/16] 0.0, 128
    %28 = vxpose.xlu0.b32.cont [5/16] 0.0, 128
    %29 = vxpose.xlu0.b32.cont [6/16] 0.0, 128
    %30 = vxpose.xlu0.b32.cont [7/16] 0.0, 128
    %31 = vxpose.xlu0.b32.cont [8/16] 0.0, 128
    %32 = vxpose.xlu0.b32.cont [9/16] 0.0, 128
    %33 = vxpose.xlu0.b32.cont [10/16] 0.0, 128
    %34 = vxpose.xlu0.b32.cont [11/16] 0.0, 128
    %35 = vxpose.xlu0.b32.cont [12/16] 0.0, 128
    %36 = vxpose.xlu0.b32.cont [13/16] 0.0, 128
    %37 = vxpose.xlu0.b32.cont [14/16] 0.0, 128
    %38 = vxpose.xlu0.b32.cont [15/16] 0.0, 128
    %39 = vxpose.xlu0.b32.end [16/16] 0.0, 128
    %v40 = vpop.trf.xlu0
    %v41 = vpop.trf.xlu0
    %v42 = vpop.trf.xlu0
    %v43 = vpop.trf.xlu0
    %v44 = vpop.trf.xlu0
    %v45 = vpop.trf.xlu0
    %v46 = vpop.trf.xlu0
    %v47 = vpop.trf.xlu0
    %v48 = vpop.trf.xlu0
    %v49 = vpop.trf.xlu0
    %v50 = vpop.trf.xlu0
    %v51 = vpop.trf.xlu0
    %v52 = vpop.trf.xlu0
    %v53 = vpop.trf.xlu0
    %v54 = vpop.trf.xlu0
    %v55 = vpop.trf.xlu0
    %vm56 = vcmask 130048
    %57 = vst.msk [vmem:[%s1] sm:$0xff] %vm56, %v40
    %58 = vst.msk [vmem:[%s1 + $0x8] sm:$0xff] %vm56, %v41
    %59 = vst.msk [vmem:[%s1 + $0x10] sm:$0xff] %vm56, %v42
    %60 = vst.msk [vmem:[%s1 + $0x18] sm:$0xff] %vm56, %v43
    %s61 = scalar_lea.vmem [#allocation2], 16
    %v62 = vld [vmem:[%s61] sm:$0xff]
    %v63 = vld [vmem:[%s61 + $0x8] sm:$0xff]
    %64 = vxpose.xlu0.b32.start [1/16] %v62, 128
    %65 = vxpose.xlu0.b32.cont [2/16] %v63, 128
    %66 = vxpose.xlu0.b32.cont [3/16] 0.0, 128
    %67 = vxpose.xlu0.b32.cont [4/16] 0.0, 128
    %68 = vxpose.xlu0.b32.cont [5/16] 0.0, 128
    %69 = vxpose.xlu0.b32.cont [6/16] 0.0, 128
    %70 = vxpose.xlu0.b32.cont [7/16] 0.0, 128
    %71 = vxpose.xlu0.b32.cont [8/16] 0.0, 128
    %72 = vxpose.xlu0.b32.cont [9/16] 0.0, 128
    %73 = vxpose.xlu0.b32.cont [10/16] 0.0, 128
    %74 = vxpose.xlu0.b32.cont [11/16] 0.0, 128
    %75 = vxpose.xlu0.b32.cont [12/16] 0.0, 128
    %76 = vxpose.xlu0.b32.cont [13/16] 0.0, 128
    %77 = vxpose.xlu0.b32.cont [14/16] 0.0, 128
    %78 = vxpose.xlu0.b32.cont [15/16] 0.0, 128
    %79 = vxpose.xlu0.b32.end [16/16] 0.0, 128
    %v80 = vpop.trf.xlu0
    %v81 = vpop.trf.xlu0
    %v82 = vpop.trf.xlu0
    %v83 = vpop.trf.xlu0
    %v84 = vpop.trf.xlu0
    %v85 = vpop.trf.xlu0
    %v86 = vpop.trf.xlu0
    %v87 = vpop.trf.xlu0
    %v88 = vpop.trf.xlu0
    %v89 = vpop.trf.xlu0
    %v90 = vpop.trf.xlu0
    %v91 = vpop.trf.xlu0
    %v92 = vpop.trf.xlu0
    %v93 = vpop.trf.xlu0
    %v94 = vpop.trf.xlu0
    %v95 = vpop.trf.xlu0
    %s96 = scalar_lea.vmem %s1, 32
    %97 = vst.msk [vmem:[%s96] sm:$0xff] %vm56, %v80
    %98 = vst.msk [vmem:[%s96 + $0x8] sm:$0xff] %vm56, %v81
    %99 = vst.msk [vmem:[%s96 + $0x10] sm:$0xff] %vm56, %v82
    %100 = vst.msk [vmem:[%s96 + $0x18] sm:$0xff] %vm56, %v83
    %s101 = scalar_lea.vmem [#allocation2], 32
    %v102 = vld [vmem:[%s101] sm:$0xff]
    %v103 = vld [vmem:[%s101 + $0x8] sm:$0xff]
    %104 = vxpose.xlu0.b32.start [1/16] %v102, 128
    %105 = vxpose.xlu0.b32.cont [2/16] %v103, 128
    %106 = vxpose.xlu0.b32.cont [3/16] 0.0, 128
    %107 = vxpose.xlu0.b32.cont [4/16] 0.0, 128
    %108 = vxpose.xlu0.b32.cont [5/16] 0.0, 128
    %109 = vxpose.xlu0.b32.cont [6/16] 0.0, 128
    %110 = vxpose.xlu0.b32.cont [7/16] 0.0, 128
    %111 = vxpose.xlu0.b32.cont [8/16] 0.0, 128
    %112 = vxpose.xlu0.b32.cont [9/16] 0.0, 128
    %113 = vxpose.xlu0.b32.cont [10/16] 0.0, 128
    %114 = vxpose.xlu0.b32.cont [11/16] 0.0, 128
    %115 = vxpose.xlu0.b32.cont [12/16] 0.0, 128
    %116 = vxpose.xlu0.b32.cont [13/16] 0.0, 128
    %117 = vxpose.xlu0.b32.cont [14/16] 0.0, 128
    %118 = vxpose.xlu0.b32.cont [15/16] 0.0, 128
    %119 = vxpose.xlu0.b32.end [16/16] 0.0, 128
    %v120 = vpop.trf.xlu0
    %v121 = vpop.trf.xlu0
    %v122 = vpop.trf.xlu0
    %v123 = vpop.trf.xlu0
    %v124 = vpop.trf.xlu0
    %v125 = vpop.trf.xlu0
    %v126 = vpop.trf.xlu0
    %v127 = vpop.trf.xlu0
    %v128 = vpop.trf.xlu0
    %v129 = vpop.trf.xlu0
    %v130 = vpop.trf.xlu0
    %v131 = vpop.trf.xlu0
    %v132 = vpop.trf.xlu0
    %v133 = vpop.trf.xlu0
    %v134 = vpop.trf.xlu0
    %v135 = vpop.trf.xlu0
    %s136 = scalar_lea.vmem %s1, 64
    %137 = vst.msk [vmem:[%s136] sm:$0xff] %vm56, %v120
    %138 = vst.msk [vmem:[%s136 + $0x8] sm:$0xff] %vm56, %v121
    %139 = vst.msk [vmem:[%s136 + $0x10] sm:$0xff] %vm56, %v122
    %140 = vst.msk [vmem:[%s136 + $0x18] sm:$0xff] %vm56, %v123
    %s141 = scalar_lea.vmem [#allocation2], 48
    %v142 = vld [vmem:[%s141] sm:$0xff]
    %v143 = vld [vmem:[%s141 + $0x8] sm:$0xff]
    %144 = vxpose.xlu0.b32.start [1/16] %v142, 128
    %145 = vxpose.xlu0.b32.cont [2/16] %v143, 128
    %146 = vxpose.xlu0.b32.cont [3/16] 0.0, 128
    %147 = vxpose.xlu0.b32.cont [4/16] 0.0, 128
    %148 = vxpose.xlu0.b32.cont [5/16] 0.0, 128
    %149 = vxpose.xlu0.b32.cont [6/16] 0.0, 128
    %150 = vxpose.xlu0.b32.cont [7/16] 0.0, 128
    %151 = vxpose.xlu0.b32.cont [8/16] 0.0, 128
    %152 = vxpose.xlu0.b32.cont [9/16] 0.0, 128
    %153 = vxpose.xlu0.b32.cont [10/16] 0.0, 128
    %154 = vxpose.xlu0.b32.cont [11/16] 0.0, 128
    %155 = vxpose.xlu0.b32.cont [12/16] 0.0, 128
    %156 = vxpose.xlu0.b32.cont [13/16] 0.0, 128
    %157 = vxpose.xlu0.b32.cont [14/16] 0.0, 128
    %158 = vxpose.xlu0.b32.cont [15/16] 0.0, 128
    %159 = vxpose.xlu0.b32.end [16/16] 0.0, 128
    %v160 = vpop.trf.xlu0
    %v161 = vpop.trf.xlu0
    %v162 = vpop.trf.xlu0
    %v163 = vpop.trf.xlu0
    %v164 = vpop.trf.xlu0
    %v165 = vpop.trf.xlu0
    %v166 = vpop.trf.xlu0
    %v167 = vpop.trf.xlu0
    %v168 = vpop.trf.xlu0
    %v169 = vpop.trf.xlu0
    %v170 = vpop.trf.xlu0
    %v171 = vpop.trf.xlu0
    %v172 = vpop.trf.xlu0
    %v173 = vpop.trf.xlu0
    %v174 = vpop.trf.xlu0
    %v175 = vpop.trf.xlu0
    %s176 = scalar_lea.vmem %s1, 96
    %177 = vst.msk [vmem:[%s176] sm:$0xff] %vm56, %v160
    %178 = vst.msk [vmem:[%s176 + $0x8] sm:$0xff] %vm56, %v161
    %179 = vst.msk [vmem:[%s176 + $0x10] sm:$0xff] %vm56, %v162
    %180 = vst.msk [vmem:[%s176 + $0x18] sm:$0xff] %vm56, %v163
    %s181 = scalar_lea.vmem [#allocation2], 64
    %v182 = vld [vmem:[%s181] sm:$0xff]
    %v183 = vld [vmem:[%s181 + $0x8] sm:$0xff]
    %184 = vxpose.xlu0.b32.start [1/16] %v182, 128
    %185 = vxpose.xlu0.b32.cont [2/16] %v183, 128
    %186 = vxpose.xlu0.b32.cont [3/16] 0.0, 128
    %187 = vxpose.xlu0.b32.cont [4/16] 0.0, 128
    %188 = vxpose.xlu0.b32.cont [5/16] 0.0, 128
    %189 = vxpose.xlu0.b32.cont [6/16] 0.0, 128
    %190 = vxpose.xlu0.b32.cont [7/16] 0.0, 128
    %191 = vxpose.xlu0.b32.cont [8/16] 0.0, 128
    %192 = vxpose.xlu0.b32.cont [9/16] 0.0, 128
    %193 = vxpose.xlu0.b32.cont [10/16] 0.0, 128
    %194 = vxpose.xlu0.b32.cont [11/16] 0.0, 128
    %195 = vxpose.xlu0.b32.cont [12/16] 0.0, 128
    %196 = vxpose.xlu0.b32.cont [13/16] 0.0, 128
    %197 = vxpose.xlu0.b32.cont [14/16] 0.0, 128
    %198 = vxpose.xlu0.b32.cont [15/16] 0.0, 128
    %199 = vxpose.xlu0.b32.end [16/16] 0.0, 128
    %v200 = vpop.trf.xlu0
    %v201 = vpop.trf.xlu0
    %v202 = vpop.trf.xlu0
    %v203 = vpop.trf.xlu0
    %v204 = vpop.trf.xlu0
    %v205 = vpop.trf.xlu0
    %v206 = vpop.trf.xlu0
    %v207 = vpop.trf.xlu0
    %v208 = vpop.trf.xlu0
    %v209 = vpop.trf.xlu0
    %v210 = vpop.trf.xlu0
    %v211 = vpop.trf.xlu0
    %v212 = vpop.trf.xlu0
    %v213 = vpop.trf.xlu0
    %v214 = vpop.trf.xlu0
    %v215 = vpop.trf.xlu0
    %s216 = scalar_lea.vmem %s1, 128
    %217 = vst.msk [vmem:[%s216] sm:$0xff] %vm56, %v200
    %218 = vst.msk [vmem:[%s216 + $0x8] sm:$0xff] %vm56, %v201
    %219 = vst.msk [vmem:[%s216 + $0x10] sm:$0xff] %vm56, %v202
    %220 = vst.msk [vmem:[%s216 + $0x18] sm:$0xff] %vm56, %v203
    %s221 = scalar_lea.vmem [#allocation2], 80
    %v222 = vld [vmem:[%s221] sm:$0xff]
    %v223 = vld [vmem:[%s221 + $0x8] sm:$0xff]
    %224 = vxpose.xlu0.b32.start [1/16] %v222, 128
    %225 = vxpose.xlu0.b32.cont [2/16] %v223, 128
    %226 = vxpose.xlu0.b32.cont [3/16] 0.0, 128
    %227 = vxpose.xlu0.b32.cont [4/16] 0.0, 128
    %228 = vxpose.xlu0.b32.cont [5/16] 0.0, 128
    %229 = vxpose.xlu0.b32.cont [6/16] 0.0, 128
    %230 = vxpose.xlu0.b32.cont [7/16] 0.0, 128
    %231 = vxpose.xlu0.b32.cont [8/16] 0.0, 128
    %232 = vxpose.xlu0.b32.cont [9/16] 0.0, 128
    %233 = vxpose.xlu0.b32.cont [10/16] 0.0, 128
    %234 = vxpose.xlu0.b32.cont [11/16] 0.0, 128
    %235 = vxpose.xlu0.b32.cont [12/16] 0.0, 128
    %236 = vxpose.xlu0.b32.cont [13/16] 0.0, 128
    %237 = vxpose.xlu0.b32.cont [14/16] 0.0, 128
    %238 = vxpose.xlu0.b32.cont [15/16] 0.0, 128
    %239 = vxpose.xlu0.b32.end [16/16] 0.0, 128
    %v240 = vpop.trf.xlu0
    %v241 = vpop.trf.xlu0
    %v242 = vpop.trf.xlu0
    %v243 = vpop.trf.xlu0
    %v244 = vpop.trf.xlu0
    %v245 = vpop.trf.xlu0
    %v246 = vpop.trf.xlu0
    %v247 = vpop.trf.xlu0
    %v248 = vpop.trf.xlu0
    %v249 = vpop.trf.xlu0
    %v250 = vpop.trf.xlu0
    %v251 = vpop.trf.xlu0
    %v252 = vpop.trf.xlu0
    %v253 = vpop.trf.xlu0
    %v254 = vpop.trf.xlu0
    %v255 = vpop.trf.xlu0
    %s256 = scalar_lea.vmem %s1, 160
    %257 = vst.msk [vmem:[%s256] sm:$0xff] %vm56, %v240
    %258 = vst.msk [vmem:[%s256 + $0x8] sm:$0xff] %vm56, %v241
    %259 = vst.msk [vmem:[%s256 + $0x10] sm:$0xff] %vm56, %v242
    %260 = vst.msk [vmem:[%s256 + $0x18] sm:$0xff] %vm56, %v243
    %s261 = scalar_lea.vmem [#allocation2], 96
    %v262 = vld [vmem:[%s261] sm:$0xff]
    %v263 = vld [vmem:[%s261 + $0x8] sm:$0xff]
    %264 = vxpose.xlu0.b32.start [1/16] %v262, 128
    %265 = vxpose.xlu0.b32.cont [2/16] %v263, 128
    %266 = vxpose.xlu0.b32.cont [3/16] 0.0, 128
    %267 = vxpose.xlu0.b32.cont [4/16] 0.0, 128
    %268 = vxpose.xlu0.b32.cont [5/16] 0.0, 128
    %269 = vxpose.xlu0.b32.cont [6/16] 0.0, 128
    %270 = vxpose.xlu0.b32.cont [7/16] 0.0, 128
    %271 = vxpose.xlu0.b32.cont [8/16] 0.0, 128
    %272 = vxpose.xlu0.b32.cont [9/16] 0.0, 128
    %273 = vxpose.xlu0.b32.cont [10/16] 0.0, 128
    %274 = vxpose.xlu0.b32.cont [11/16] 0.0, 128
    %275 = vxpose.xlu0.b32.cont [12/16] 0.0, 128
    %276 = vxpose.xlu0.b32.cont [13/16] 0.0, 128
    %277 = vxpose.xlu0.b32.cont [14/16] 0.0, 128
    %278 = vxpose.xlu0.b32.cont [15/16] 0.0, 128
    %279 = vxpose.xlu0.b32.end [16/16] 0.0, 128
    %v280 = vpop.trf.xlu0
    %v281 = vpop.trf.xlu0
    %v282 = vpop.trf.xlu0
    %v283 = vpop.trf.xlu0
    %v284 = vpop.trf.xlu0
    %v285 = vpop.trf.xlu0
    %v286 = vpop.trf.xlu0
    %v287 = vpop.trf.xlu0
    %v288 = vpop.trf.xlu0
    %v289 = vpop.trf.xlu0
    %v290 = vpop.trf.xlu0
    %v291 = vpop.trf.xlu0
    %v292 = vpop.trf.xlu0
    %v293 = vpop.trf.xlu0
    %v294 = vpop.trf.xlu0
    %v295 = vpop.trf.xlu0
    %s296 = scalar_lea.vmem %s1, 192
    %297 = vst.msk [vmem:[%s296] sm:$0xff] %vm56, %v280
    %298 = vst.msk [vmem:[%s296 + $0x8] sm:$0xff] %vm56, %v281
    %299 = vst.msk [vmem:[%s296 + $0x10] sm:$0xff] %vm56, %v282
    %300 = vst.msk [vmem:[%s296 + $0x18] sm:$0xff] %vm56, %v283
    %s301 = scalar_lea.vmem [#allocation2], 112
    %v302 = vld [vmem:[%s301] sm:$0xff]
    %v303 = vld [vmem:[%s301 + $0x8] sm:$0xff]
    %304 = vxpose.xlu0.b32.start [1/16] %v302, 128
    %305 = vxpose.xlu0.b32.cont [2/16] %v303, 128
    %306 = vxpose.xlu0.b32.cont [3/16] 0.0, 128
    %307 = vxpose.xlu0.b32.cont [4/16] 0.0, 128
    %308 = vxpose.xlu0.b32.cont [5/16] 0.0, 128
    %309 = vxpose.xlu0.b32.cont [6/16] 0.0, 128
    %310 = vxpose.xlu0.b32.cont [7/16] 0.0, 128
    %311 = vxpose.xlu0.b32.cont [8/16] 0.0, 128
    %312 = vxpose.xlu0.b32.cont [9/16] 0.0, 128
    %313 = vxpose.xlu0.b32.cont [10/16] 0.0, 128
    %314 = vxpose.xlu0.b32.cont [11/16] 0.0, 128
    %315 = vxpose.xlu0.b32.cont [12/16] 0.0, 128
    %316 = vxpose.xlu0.b32.cont [13/16] 0.0, 128
    %317 = vxpose.xlu0.b32.cont [14/16] 0.0, 128
    %318 = vxpose.xlu0.b32.cont [15/16] 0.0, 128
    %319 = vxpose.xlu0.b32.end [16/16] 0.0, 128
    %v320 = vpop.trf.xlu0
    %v321 = vpop.trf.xlu0
    %v322 = vpop.trf.xlu0
    %v323 = vpop.trf.xlu0
    %v324 = vpop.trf.xlu0
    %v325 = vpop.trf.xlu0
    %v326 = vpop.trf.xlu0
    %v327 = vpop.trf.xlu0
    %v328 = vpop.trf.xlu0
    %v329 = vpop.trf.xlu0
    %v330 = vpop.trf.xlu0
    %v331 = vpop.trf.xlu0
    %v332 = vpop.trf.xlu0
    %v333 = vpop.trf.xlu0
    %v334 = vpop.trf.xlu0
    %v335 = vpop.trf.xlu0
    %s336 = scalar_lea.vmem %s1, 224
    %337 = vst.msk [vmem:[%s336] sm:$0xff] %vm56, %v320
    %338 = vst.msk [vmem:[%s336 + $0x8] sm:$0xff] %vm56, %v321
    %339 = vst.msk [vmem:[%s336 + $0x10] sm:$0xff] %vm56, %v322
    %340 = vst.msk [vmem:[%s336 + $0x18] sm:$0xff] %vm56, %v323
    // Predicated region
    $region10: #{tpu_custom_call.1} parent=1 // pred_check
      _
    $region11: #{tpu_custom_call.1} parent=1 // pred_check_branch
      %342 = sbr.rel (0) target = $region13
    $region12: #{tpu_custom_call.1} parent=1 // pred_region
      _
    $region13: #{tpu_custom_call.1} parent=1 // pred_fallthru
      _
    // Predicated region
    $region14: #{tpu_custom_call.1} parent=1 // pred_check
      _
    $region15: #{tpu_custom_call.1} parent=1 // pred_check_branch
      %344 = sbr.rel (0) target = $region17
    $region16: #{tpu_custom_call.1} parent=1 // pred_region
      _
    $region17: #{tpu_custom_call.1} parent=1 // pred_fallthru
      _
    %345 = vsyncpa [#allocation3], 1

</llo_original>
